<compile_context>
chip_gen: v7x
topology: tpu7x:2x2x1
jax: 0.10.0
libtpu: 0.0.40
codegen_flags: <defaults>
</compile_context>

<pallas_src>
import functools

import jax
import jax.numpy as jnp
from jax import lax
from jax.experimental import pallas as pl
from jax.experimental.pallas import tpu as pltpu


# -----------------------------------------------------------------------------
# Pallas kernel: fully fused INR path (block-diag encoders + decoder)
# Transposed layout: activations are [F, N] (N on lanes), weights pre-transposed.
# -----------------------------------------------------------------------------
def _fused_inr_kernel(*refs, num_sine_layers, omega):
    feat_ref = refs[0]
    out_ref = refs[-1]
    h = feat_ref[...]                                   # [F0, N]
    idx = 1
    for _ in range(num_sine_layers):
        w = refs[idx][...]                              # [Fout, Fin]
        b = refs[idx + 1][...]                          # [Fout, 1]
        idx += 2
        h = jnp.sin(omega * (jnp.dot(w, h, preferred_element_type=jnp.float32) + b))
    w = refs[idx][...]                                  # [1, Fin]  (final, no sine)
    b = refs[idx + 1][...]                              # [1, 1]
    out = jnp.dot(w, h, preferred_element_type=jnp.float32) + b
    out_ref[...] = out.astype(out_ref.dtype)            # [1, N] lane-dense


def fused_inr(feats_t, flat_params, num_sine_layers, omega):
    """feats_t: [F_pad, N] transposed features -> [1, N] illu residual."""
    N = feats_t.shape[1]
    kernel = functools.partial(
        _fused_inr_kernel,
        num_sine_layers=int(num_sine_layers),
        omega=float(omega),
    )
    return pl.pallas_call(
        kernel,
        out_shape=jax.ShapeDtypeStruct((1, N), jnp.float32),
    )(feats_t, *flat_params)


# -----------------------------------------------------------------------------
# Pallas kernel: RGB [3,H,W] -> (H, S, V, grayscale) stacked [4,H,W]
# -----------------------------------------------------------------------------
def _rgb2hsv_gray_kernel(img_ref, out_ref):
    r = img_ref[0]
    g = img_ref[1]
    b = img_ref[2]
    maxc = jnp.maximum(jnp.maximum(r, g), b)
    minc = jnp.minimum(jnp.minimum(r, g), b)
    delta = maxc - minc
    s = jnp.where(maxc > 0.0, delta / (maxc + 1e-8), 0.0)
    delta_safe = jnp.where(delta > 0.0, delta, 1.0)
    rc = (maxc - r) / delta_safe
    gc = (maxc - g) / delta_safe
    bc = (maxc - b) / delta_safe
    hh = jnp.where(maxc == r, bc - gc,
                   jnp.where(maxc == g, 2.0 + rc - bc, 4.0 + gc - rc))
    hh = (hh / 6.0) % 1.0
    hh = jnp.where(delta > 0.0, hh, 0.0)
    out_ref[0] = hh * (2.0 * jnp.pi)
    out_ref[1] = s
    out_ref[2] = maxc
    out_ref[3] = 0.299 * r + 0.587 * g + 0.114 * b


def _row_tile(h):
    """Largest safe row tile (full array if small, divisor of h otherwise)."""
    if h <= 512:
        return h
    for t in range(512, 7, -1):
        if h % t == 0 and t % 8 == 0:
            return t
    return h


def rgb_to_hsv_gray(img3):
    """img3: [3, H, W] -> (h, s, v, gray) planes, each [H, W]."""
    _, H, W = img3.shape
    rt = _row_tile(H)
    out = pl.pallas_call(
        _rgb2hsv_gray_kernel,
        out_shape=jax.ShapeDtypeStruct((4, H, W), jnp.float32),
        grid=(H // rt,),
        in_specs=[pl.BlockSpec((3, rt, W), lambda i: (0, i, 0))],
        out_specs=pl.BlockSpec((4, rt, W), lambda i: (0, i, 0)),
        compiler_params=pltpu.CompilerParams(dimension_semantics=("parallel",)),
    )(img3)
    return out[0], out[1], out[2], out[3]


# -----------------------------------------------------------------------------
# Pallas kernel: fused guided-filter compose (A*x+b, clip) + HSV -> RGB
# -----------------------------------------------------------------------------
def _compose_hsv2rgb_kernel(a_ref, bb_ref, x_ref, h_ref, s_ref, rgb_ref):
    v = jnp.clip(a_ref[...] * x_ref[...] + bb_ref[...], 0.0, 1.0)
    hp = h_ref[...] * (6.0 / (2.0 * jnp.pi))
    s = s_ref[...]
    i = jnp.floor(hp)
    f = hp - i
    p = v * (1.0 - s)
    q = v * (1.0 - s * f)
    t = v * (1.0 - s * (1.0 - f))
    i = i % 6.0
    r = jnp.where(i == 0, v, jnp.where(i == 1, q, jnp.where(i == 2, p,
        jnp.where(i == 3, p, jnp.where(i == 4, t, v)))))
    g = jnp.where(i == 0, t, jnp.where(i == 1, v, jnp.where(i == 2, v,
        jnp.where(i == 3, q, jnp.where(i == 4, p, p)))))
    b = jnp.where(i == 0, p, jnp.where(i == 1, p, jnp.where(i == 2, t,
        jnp.where(i == 3, v, jnp.where(i == 4, v, q)))))
    rgb_ref[0] = r
    rgb_ref[1] = g
    rgb_ref[2] = b


def compose_hsv_to_rgb(a_hr, b_hr, x_hr, h_hr, s_hr):
    H, W = x_hr.shape
    rt = _row_tile(H)
    spec2d = pl.BlockSpec((rt, W), lambda i: (i, 0))
    return pl.pallas_call(
        _compose_hsv2rgb_kernel,
        out_shape=jax.ShapeDtypeStruct((3, H, W), jnp.float32),
        grid=(H // rt,),
        in_specs=[spec2d, spec2d, spec2d, spec2d, spec2d],
        out_specs=pl.BlockSpec((3, rt, W), lambda i: (0, i, 0)),
        compiler_params=pltpu.CompilerParams(dimension_semantics=("parallel",)),
    )(a_hr, b_hr, x_hr, h_hr, s_hr)


# -----------------------------------------------------------------------------
# Pallas kernel: low-res illumination / enhancement math (lane-dense planes)
# -----------------------------------------------------------------------------
def _lowres_kernel(in_ref, out_ref, *, depth_gamma):
    img = in_ref[0]
    res = in_ref[1]
    d = in_ref[2]
    dmax = jnp.maximum(jnp.max(d), 1e-8)          # epsilon: avoid /0 on black depth
    illu = img + res
    res2 = res * (1.0 + depth_gamma * (1.0 - d / dmax))
    illu2 = img + res2
    out_ref[0] = illu
    out_ref[1] = res2
    out_ref[2] = illu2
    out_ref[3] = img / (illu2 + 1e-8)


def _lane_dense_shape(shape2d):
    n = shape2d[0] * shape2d[1]
    if n >= 128 and n % 128 == 0:
        return (n // 128, 128)
    return tuple(shape2d)


def lowres_enhance(image_lr2d, illu_res_lr2d, depth_lr2d, depth_gamma):
    ds_shape = image_lr2d.shape
    shp = _lane_dense_shape(ds_shape)
    stacked = jnp.stack([image_lr2d.reshape(shp),
                         illu_res_lr2d.reshape(shp),
                         depth_lr2d.reshape(shp)], axis=0)
    out = pl.pallas_call(
        functools.partial(_lowres_kernel, depth_gamma=float(depth_gamma)),
        out_shape=jax.ShapeDtypeStruct((4,) + shp, jnp.float32),
    )(stacked)
    return tuple(out[i].reshape(ds_shape) for i in range(4))


# -----------------------------------------------------------------------------
# Pallas kernel: guided-filter A / b solve (lane-dense, single stacked input)
# -----------------------------------------------------------------------------
def _gf_ab_kernel(m_ref, ab_ref, *, eps):
    mx = m_ref[0]
    my = m_ref[1]
    mxy = m_ref[2]
    mxx = m_ref[3]
    cov = mxy - mx * my
    var = mxx - mx * mx
    a = cov / (var + eps)
    ab_ref[0] = a
    ab_ref[1] = my - a * mx


# -----------------------------------------------------------------------------
# Plain-JAX glue
# -----------------------------------------------------------------------------
def resize2d(x, size, method):
    return jax.image.resize(x, (size, size), method=method)


def box_norm(shape, radius, dtype=jnp.float32):
    k = 2 * radius + 1
    zero = jnp.array(0.0, dtype)
    ones = jnp.ones(shape, dtype)
    return lax.reduce_window(ones, zero, lax.add, (k, k), (1, 1), "SAME")


def box_filter(x, radius, norm):
    k = 2 * radius + 1
    zero = jnp.array(0.0, x.dtype)
    s = lax.reduce_window(x, zero, lax.add, (k, k), (1, 1), "SAME")
    return s / norm


def im2col(x2d, ws):
    """[H, W] -> [H*W, ws*ws] zero-padded sliding windows (F.unfold style)."""
    h, w = x2d.shape
    p = ws // 2
    xp = jnp.pad(x2d, ((p, p), (p, p)))
    cols = []
    for dy in range(ws):
        for dx in range(ws):
            cols.append(xp[dy:dy + h, dx:dx + w])
    return jnp.stack(cols, axis=-1).reshape(h * w, ws * ws)


def make_coords(down_size):
    c = jnp.linspace(-1.0, 1.0, down_size, dtype=jnp.float32)
    yy, xx = jnp.meshgrid(c, c, indexing="ij")
    return jnp.stack([xx.ravel(), yy.ravel()], axis=-1)


def boundary_edge(depth2d, eps):
    # BoundaryAwarePrior (normalized=False): thresholded finite differences.
    gx = jnp.abs(jnp.diff(depth2d, axis=1, prepend=depth2d[:, :1]))
    gy = jnp.abs(jnp.diff(depth2d, axis=0, prepend=depth2d[:1, :]))
    return ((gx > eps) | (gy > eps)).astype(jnp.float32)


def fast_guided_filter_to_rgb(x_lr, y_lr, x_hr, h_hr, s_hr, radius, eps=1e-8):
    norm = box_norm(x_lr.shape, radius, x_lr.dtype)
    mx = box_filter(x_lr, radius, norm)
    my = box_filter(y_lr, radius, norm)
    mxy = box_filter(x_lr * y_lr, radius, norm)
    mxx = box_filter(x_lr * x_lr, radius, norm)
    shp = _lane_dense_shape(x_lr.shape)
    stacked = jnp.stack([mx.reshape(shp), my.reshape(shp),
                         mxy.reshape(shp), mxx.reshape(shp)], axis=0)
    ab = pl.pallas_call(
        functools.partial(_gf_ab_kernel, eps=float(eps)),
        out_shape=jax.ShapeDtypeStruct((2,) + shp, jnp.float32),
    )(stacked)
    a = box_filter(ab[0].reshape(x_lr.shape), radius, norm)
    bb = box_filter(ab[1].reshape(x_lr.shape), radius, norm)
    hh, wh = x_hr.shape
    a_hr = jax.image.resize(a, (hh, wh), method="bilinear")
    b_hr = jax.image.resize(bb, (hh, wh), method="bilinear")
    # fused compose (clip(A*x+b)) + HSV->RGB: the enhanced V plane never hits HBM
    return compose_hsv_to_rgb(a_hr, b_hr, x_hr, h_hr, s_hr)


# -----------------------------------------------------------------------------
# Parameter init (deterministic, SIREN-style) + fused block-diagonal assembly
# -----------------------------------------------------------------------------
def _init_siren(key, dims, omega):
    weights, biases = [], []
    for idx, (fin, fout) in enumerate(zip(dims[:-1], dims[1:])):
        key, kw, kb = jax.random.split(key, 3)
        bound = (1.0 / fin) if idx == 0 else ((6.0 / fin) ** 0.5 / omega)
        weights.append(jax.random.uniform(kw, (fin, fout), jnp.float32, -bound, bound))
        biases.append(jax.random.uniform(kb, (1, fout), jnp.float32, -bound, bound))
    return weights, biases, key


def init_params(key, window_size, hidden_channels, hidden_layers, out_layers, omega):
    mid = hidden_channels // 2
    params = {"value_nets": []}
    for ws in window_size:
        dims = [ws * ws] + [mid] * (hidden_layers + 1)
        w, b, key = _init_siren(key, dims, omega)
        params["value_nets"].append((w, b))
    dims = [2] + [mid] * (hidden_layers + 1)
    w, b, key = _init_siren(key, dims, omega)
    params["coords_net"] = (w, b)
    dec_in = mid * (len(window_size) + 1)
    dims = [dec_in] * out_layers + [1]
    w, b, key = _init_siren(key, dims, omega)
    params["output_net"] = (w, b)
    return params, mid


def build_fused_inr_params(params, window_size, mid):
    """Merge value_nets + coords_net into block-diagonal layers, append decoder.

    Returns (flat transposed params, num_sine_layers, fin_pad, fin_tot)."""
    branches = list(params["value_nets"]) + [params["coords_net"]]
    fins = [ws * ws for ws in window_size] + [2]
    n_br = len(branches)
    width = n_br * mid
    n_layers = len(branches[0][0])          # hidden_layers + 1 per branch
    fin_tot = sum(fins)
    fin_pad = ((fin_tot + 127) // 128) * 128

    layer_ws, layer_bs = [], []
    # layer 0: block-diagonal [fin_pad, width] (zero-padded rows -> no-op)
    w0 = jnp.zeros((fin_pad, width), jnp.float32)
    b0 = jnp.zeros((1, width), jnp.float32)
    row = 0
    for bi, ((ws_b, bs_b), fin) in enumerate(zip(branches, fins)):
        w0 = w0.at[row:row + fin, bi * mid:(bi + 1) * mid].set(ws_b[0])
        b0 = b0.at[:, bi * mid:(bi + 1) * mid].set(bs_b[0])
        row += fin
    layer_ws.append(w0)
    layer_bs.append(b0)
    for l in range(1, n_layers):
        wl = jnp.zeros((width, width), jnp.float32)
        bl = jnp.zeros((1, width), jnp.float32)
        for bi, (ws_b, bs_b) in enumerate(branches):
            wl = wl.at[bi * mid:(bi + 1) * mid, bi * mid:(bi + 1) * mid].set(ws_b[l])
            bl = bl.at[:, bi * mid:(bi + 1) * mid].set(bs_b[l])
        layer_ws.append(wl)
        layer_bs.append(bl)

    # decoder layers (input is exactly the concatenated branch outputs)
    dec_ws, dec_bs = params["output_net"]
    layer_ws.extend(dec_ws)
    layer_bs.extend(dec_bs)

    num_sine_layers = len(layer_ws) - 1     # sine everywhere except final layer
    flat = []
    for w, b in zip(layer_ws, layer_bs):    # pre-transpose for [F, N] layout
        flat.append(w.T)
        flat.append(b.T)
    return flat, num_sine_layers, fin_pad, fin_tot


# -----------------------------------------------------------------------------
# Full forward pass (mirrors MLP_HSV.forward)
# -----------------------------------------------------------------------------
def mlp_hsv_forward(image, params, *, window_size=(3, 5, 7), down_size=16,
                    depth_gamma=0.7, gf_radius=3, edge_threshold=0.05,
                    omega_0=30.0):
    b, c, h, w = image.shape
    assert b == 1 and c == 3

    # rgb -> hsv (+ V channel + grayscale depth) in one row-tiled Pallas kernel
    h_p, s_p, v_p, depth2d = rgb_to_hsv_gray(image[0])
    edge2d = boundary_edge(depth2d, edge_threshold)

    # bicubic downsampling (glue)
    image_v_lr = resize2d(v_p, down_size, "bicubic")
    depth_lr2d = resize2d(depth2d, down_size, "bicubic")
    edge_lr2d = resize2d(edge2d, down_size, "bicubic")

    # assemble the single transposed feature matrix for the fused INR kernel
    patch_feats = [im2col(image_v_lr, ws_) for ws_ in window_size]
    coord_feats = make_coords(down_size)
    feats = jnp.concatenate(patch_feats + [coord_feats], axis=-1)   # [N, fin_tot]
    flat_params, n_sine, fin_pad, fin_tot = params["fused"]
    feats_t = jnp.pad(feats.T, ((0, fin_pad - fin_tot), (0, 0)))    # [fin_pad, N]

    # fused INR path: block-diag encoders + coords + decoder, one pallas_call
    illu_res_row = fused_inr(feats_t, flat_params, n_sine, omega_0)  # [1, N]
    illu_res_lr2d = illu_res_row.reshape(down_size, down_size)

    image_lr2d = image_v_lr                                          # image_lrs[0]

    illu_lr2d, illu_res2_2d, illu_lr2_2d, enhanced_lr2d = lowres_enhance(
        image_lr2d, illu_res_lr2d, depth_lr2d, depth_gamma)

    # TODO(synk): use_denoise path (kornia bilateral_blur) not implemented.
    rgb = fast_guided_filter_to_rgb(image_lr2d, enhanced_lr2d, v_p, h_p, s_p,
                                    gf_radius)
    enhanced = rgb[None]

    return {
        "image": image,
        "depth": depth2d[None, None],
        "edge": edge2d[None, None],
        "image_lr": image_lr2d[None, None],
        "depth_lr": depth_lr2d[None, None],
        "edge_lr": edge_lr2d[None, None],
        "illu_res_lr": illu_res_lr2d[None, None],
        "illu_res_lr2": illu_res2_2d[None, None],
        "illu_lr": illu_lr2d[None, None],
        "illu_lr2": illu_lr2_2d[None, None],
        "enhanced_lr": enhanced_lr2d[None, None],
        "enhanced": enhanced,
    }


if __name__ == "__main__":
    key = jax.random.PRNGKey(0)
    key, k_img = jax.random.split(key)
    # small shapes: batch=1, 3 channels, 16x16 spatial, down_size=16,
    # hidden_channels=32 (mid=16), window_size=[3,5,7]
    image = jax.random.uniform(k_img, (1, 3, 16, 16), dtype=jnp.float32,
                               minval=0.05, maxval=1.0)

    window_size = (3, 5, 7)
    params, mid = init_params(jax.random.PRNGKey(1),
                              window_size=window_size,
                              hidden_channels=32,
                              hidden_layers=2,
                              out_layers=1,
                              omega=30.0)
    params["fused"] = build_fused_inr_params(params, window_size, mid)

    out = mlp_hsv_forward(image, params,
                          window_size=window_size,
                          down_size=16,
                          depth_gamma=0.7,
                          gf_radius=3,
                          edge_threshold=0.05,
                          omega_0=30.0)
    out = jax.tree_util.tree_map(jax.block_until_ready, out)

    assert out["enhanced"].shape == (1, 3, 16, 16)
    assert out["illu_res_lr"].shape == (1, 1, 16, 16)
    print("KERNEL_OK")
</pallas_src>

<mosaic_0001>
module attributes {stable_mosaic.version = 11 : i64} {
  func.func @_rgb2hsv_gray_kernel(%arg0: i32, %arg1: memref<3x16x16xf32, #tpu.memory_space<vmem>>, %arg2: memref<4x16x16xf32, #tpu.memory_space<vmem>>) attributes {dimension_semantics = [#tpu.dimension_semantics<parallel>], iteration_bounds = array<i64: 1>, scalar_prefetch = 0 : i64, scratch_operands = 0 : i64, tpu.core_type = #tpu.core_type<tc>, window_params = [{transform_indices = @transform_0, window_bounds = array<i64: 3, 16, 16>}, {transform_indices = @transform_1, window_bounds = array<i64: 4, 16, 16>}]} {
    %c0 = arith.constant 0 : index
    %c0_0 = arith.constant 0 : index
    %c0_1 = arith.constant 0 : index
    %0 = vector.load %arg1[%c0, %c0_0, %c0_1] : memref<3x16x16xf32, #tpu.memory_space<vmem>>, vector<1x16x16xf32>
    %1 = vector.shape_cast %0 : vector<1x16x16xf32> to vector<16x16xf32>
    %c1 = arith.constant 1 : index
    %c0_2 = arith.constant 0 : index
    %c0_3 = arith.constant 0 : index
    %2 = vector.load %arg1[%c1, %c0_2, %c0_3] : memref<3x16x16xf32, #tpu.memory_space<vmem>>, vector<1x16x16xf32>
    %3 = vector.shape_cast %2 : vector<1x16x16xf32> to vector<16x16xf32>
    %c2 = arith.constant 2 : index
    %c0_4 = arith.constant 0 : index
    %c0_5 = arith.constant 0 : index
    %4 = vector.load %arg1[%c2, %c0_4, %c0_5] : memref<3x16x16xf32, #tpu.memory_space<vmem>>, vector<1x16x16xf32>
    %5 = vector.shape_cast %4 : vector<1x16x16xf32> to vector<16x16xf32>
    %6 = arith.maximumf %1, %3 : vector<16x16xf32>
    %7 = arith.maximumf %6, %5 : vector<16x16xf32>
    %8 = arith.minimumf %1, %3 : vector<16x16xf32>
    %9 = arith.minimumf %8, %5 : vector<16x16xf32>
    %10 = arith.subf %7, %9 : vector<16x16xf32>
    %cst = arith.constant 0.000000e+00 : f32
    %11 = vector.broadcast %cst : f32 to vector<16x16xf32>
    %12 = arith.cmpf ogt, %7, %11 : vector<16x16xf32>
    %cst_6 = arith.constant 9.99999993E-9 : f32
    %13 = vector.broadcast %cst_6 : f32 to vector<16x16xf32>
    %14 = arith.addf %7, %13 : vector<16x16xf32>
    %15 = arith.divf %10, %14 : vector<16x16xf32>
    %cst_7 = arith.constant 0.000000e+00 : f32
    %16 = vector.broadcast %cst_7 : f32 to vector<16x16xf32>
    %17 = arith.select %12, %15, %16 : vector<16x16xi1>, vector<16x16xf32>
    %cst_8 = arith.constant 0.000000e+00 : f32
    %18 = vector.broadcast %cst_8 : f32 to vector<16x16xf32>
    %19 = arith.cmpf ogt, %10, %18 : vector<16x16xf32>
    %cst_9 = arith.constant 1.000000e+00 : f32
    %20 = vector.broadcast %cst_9 : f32 to vector<16x16xf32>
    %21 = arith.select %19, %10, %20 : vector<16x16xi1>, vector<16x16xf32>
    %22 = arith.subf %7, %1 : vector<16x16xf32>
    %23 = arith.divf %22, %21 : vector<16x16xf32>
    %24 = arith.subf %7, %3 : vector<16x16xf32>
    %25 = arith.divf %24, %21 : vector<16x16xf32>
    %26 = arith.subf %7, %5 : vector<16x16xf32>
    %27 = arith.divf %26, %21 : vector<16x16xf32>
    %28 = arith.cmpf oeq, %7, %1 : vector<16x16xf32>
    %29 = arith.subf %27, %25 : vector<16x16xf32>
    %30 = arith.cmpf oeq, %7, %3 : vector<16x16xf32>
    %cst_10 = arith.constant 2.000000e+00 : f32
    %31 = vector.broadcast %cst_10 : f32 to vector<16x16xf32>
    %32 = arith.addf %31, %23 : vector<16x16xf32>
    %33 = arith.subf %32, %27 : vector<16x16xf32>
    %cst_11 = arith.constant 4.000000e+00 : f32
    %34 = vector.broadcast %cst_11 : f32 to vector<16x16xf32>
    %35 = arith.addf %34, %25 : vector<16x16xf32>
    %36 = arith.subf %35, %23 : vector<16x16xf32>
    %37 = arith.select %30, %33, %36 : vector<16x16xi1>, vector<16x16xf32>
    %38 = arith.select %28, %29, %37 : vector<16x16xi1>, vector<16x16xf32>
    %cst_12 = arith.constant 6.000000e+00 : f32
    %39 = vector.broadcast %cst_12 : f32 to vector<16x16xf32>
    %40 = arith.divf %38, %39 : vector<16x16xf32>
    %cst_13 = arith.constant 1.000000e+00 : f32
    %41 = vector.broadcast %cst_13 : f32 to vector<16x16xf32>
    %42 = arith.remf %40, %41 : vector<16x16xf32>
    %cst_14 = arith.constant 0.000000e+00 : f32
    %43 = vector.broadcast %cst_14 : f32 to vector<16x16xf32>
    %44 = arith.cmpf one, %42, %43 : vector<16x16xf32>
    %cst_15 = arith.constant 0.000000e+00 : f32
    %45 = vector.broadcast %cst_15 : f32 to vector<16x16xf32>
    %46 = arith.cmpf olt, %42, %45 : vector<16x16xf32>
    %cst_16 = arith.constant 0.000000e+00 : f32
    %47 = arith.cmpf olt, %cst_13, %cst_16 : f32
    %48 = vector.broadcast %47 : i1 to vector<16x16xi1>
    %49 = vector.broadcast %48 : vector<16x16xi1> to vector<16x16xi1>
    %50 = arith.xori %46, %49 : vector<16x16xi1>
    %51 = arith.andi %50, %44 : vector<16x16xi1>
    %52 = vector.broadcast %cst_13 : f32 to vector<16x16xf32>
    %53 = arith.addf %42, %52 : vector<16x16xf32>
    %54 = arith.select %51, %53, %42 : vector<16x16xi1>, vector<16x16xf32>
    %cst_17 = arith.constant 0.000000e+00 : f32
    %55 = vector.broadcast %cst_17 : f32 to vector<16x16xf32>
    %56 = arith.cmpf ogt, %10, %55 : vector<16x16xf32>
    %cst_18 = arith.constant 0.000000e+00 : f32
    %57 = vector.broadcast %cst_18 : f32 to vector<16x16xf32>
    %58 = arith.select %56, %54, %57 : vector<16x16xi1>, vector<16x16xf32>
    %cst_19 = arith.constant 6.28318548 : f32
    %59 = vector.broadcast %cst_19 : f32 to vector<16x16xf32>
    %60 = arith.mulf %58, %59 : vector<16x16xf32>
    %c0_20 = arith.constant 0 : index
    %c0_21 = arith.constant 0 : index
    %c0_22 = arith.constant 0 : index
    %61 = vector.load %arg2[%c0_20, %c0_21, %c0_22] : memref<4x16x16xf32, #tpu.memory_space<vmem>>, vector<1x16x16xf32>
    %62 = vector.shape_cast %61 : vector<1x16x16xf32> to vector<16x16xf32>
    %63 = vector.shape_cast %60 : vector<16x16xf32> to vector<1x16x16xf32>
    tpu.vector_store %arg2[%c0_20, %c0_21, %c0_22], %63 {strides = array<i32>} : memref<4x16x16xf32, #tpu.memory_space<vmem>>, vector<1x16x16xf32>,
    %c1_23 = arith.constant 1 : index
    %c0_24 = arith.constant 0 : index
    %c0_25 = arith.constant 0 : index
    %64 = vector.load %arg2[%c1_23, %c0_24, %c0_25] : memref<4x16x16xf32, #tpu.memory_space<vmem>>, vector<1x16x16xf32>
    %65 = vector.shape_cast %64 : vector<1x16x16xf32> to vector<16x16xf32>
    %66 = vector.shape_cast %17 : vector<16x16xf32> to vector<1x16x16xf32>
    tpu.vector_store %arg2[%c1_23, %c0_24, %c0_25], %66 {strides = array<i32>} : memref<4x16x16xf32, #tpu.memory_space<vmem>>, vector<1x16x16xf32>,
    %c2_26 = arith.constant 2 : index
    %c0_27 = arith.constant 0 : index
    %c0_28 = arith.constant 0 : index
    %67 = vector.load %arg2[%c2_26, %c0_27, %c0_28] : memref<4x16x16xf32, #tpu.memory_space<vmem>>, vector<1x16x16xf32>
    %68 = vector.shape_cast %67 : vector<1x16x16xf32> to vector<16x16xf32>
    %69 = vector.shape_cast %7 : vector<16x16xf32> to vector<1x16x16xf32>
    tpu.vector_store %arg2[%c2_26, %c0_27, %c0_28], %69 {strides = array<i32>} : memref<4x16x16xf32, #tpu.memory_space<vmem>>, vector<1x16x16xf32>,
    %cst_29 = arith.constant 2.990000e-01 : f32
    %70 = vector.broadcast %cst_29 : f32 to vector<16x16xf32>
    %71 = arith.mulf %70, %1 : vector<16x16xf32>
    %cst_30 = arith.constant 5.870000e-01 : f32
    %72 = vector.broadcast %cst_30 : f32 to vector<16x16xf32>
    %73 = arith.mulf %72, %3 : vector<16x16xf32>
    %74 = arith.addf %71, %73 : vector<16x16xf32>
    %cst_31 = arith.constant 1.140000e-01 : f32
    %75 = vector.broadcast %cst_31 : f32 to vector<16x16xf32>
    %76 = arith.mulf %75, %5 : vector<16x16xf32>
    %77 = arith.addf %74, %76 : vector<16x16xf32>
    %c3 = arith.constant 3 : index
    %c0_32 = arith.constant 0 : index
    %c0_33 = arith.constant 0 : index
    %78 = vector.load %arg2[%c3, %c0_32, %c0_33] : memref<4x16x16xf32, #tpu.memory_space<vmem>>, vector<1x16x16xf32>
    %79 = vector.shape_cast %78 : vector<1x16x16xf32> to vector<16x16xf32>
    %80 = vector.shape_cast %77 : vector<16x16xf32> to vector<1x16x16xf32>
    tpu.vector_store %arg2[%c3, %c0_32, %c0_33], %80 {strides = array<i32>} : memref<4x16x16xf32, #tpu.memory_space<vmem>>, vector<1x16x16xf32>,
    return
  }
  func.func @transform_0(%arg0: i32) -> (i32, i32, i32) {
    %c0_i32 = arith.constant 0 : i32
    %c0_i32_0 = arith.constant 0 : i32
    %c0_i32_1 = arith.constant 0 : i32
    return %c0_i32, %arg0, %c0_i32_0 : i32, i32, i32
  }
  func.func @transform_1(%arg0: i32) -> (i32, i32, i32) {
    %c0_i32 = arith.constant 0 : i32
    %c0_i32_0 = arith.constant 0 : i32
    %c0_i32_1 = arith.constant 0 : i32
    return %c0_i32, %arg0, %c0_i32_0 : i32, i32, i32
  }
}

</mosaic_0001>

<llo_original>
// kernel: tpu_custom_call.1
$region0: #{tpu_custom_call.1}
  #allocation0 [shape = 'u32[]', space=smem, size = 0x4, offset = 0x4, fixed_abs, tag = 'smem constant byte address 0x4 - core index']
  #allocation1 [shape = 'u32[144,128]{1,0:T(1,128)}', space=vmem, size = 0x12000, scoped, tag = 'internal scratch']
  %s0 = inlined_call_operand.hbm [shape: f32[3,16,16], index: 0, kind: input, shape index: {}]
  %s1 = inlined_call_operand.hbm [shape: f32[4,16,16], index: 1, kind: output, shape index: {}]
  %s2 = sld [smem:[#allocation0]]
  $region18: #{tpu_custom_call.1} parent=0
    _
  %s4 = ssub.s32 1, %s2
  %s5 = scalar_select 0, %s4, %s2
  $region1: #{tpu_custom_call.1} parent=0
    #allocation2 [shape = 'u8[24576]{0}', space=vmem, size = 0x6000, scoped, tag = 'input window, operand 0, single buffered']
    #allocation3 [shape = 's32[1]{0}', space=sflag, size = 0x4, scoped, tag = 'scoped memory for tpu_custom_call.1']
    #allocation4 [shape = 's32[1]{0}', space=sflag, size = 0x4, scoped, tag = 'scoped memory for tpu_custom_call.1']
    #allocation5 [shape = 'u8[32768]{0}', space=vmem, size = 0x8000, scoped, tag = 'output window, operand 0, single buffered']
    %6 = vsyncpa [#allocation3], 0
    %7 = vsyncpa [#allocation4], 0
    // Predicated region
    $region2: #{tpu_custom_call.1} parent=1 // pred_check
      _
    $region3: #{tpu_custom_call.1} parent=1 // pred_check_branch
      %9 = sbr.rel (0) target = $region5
    $region4: #{tpu_custom_call.1} parent=1 // pred_region
      %s11 = ssub.s32 768, 768
      %12 = vsyncadd [#allocation3], %s11
      %s13 = sshll.u32 [#allocation2], 4
      %s14 = int_to_ptr.vmem [resolvable:$true] %s13
      %19 = dma.hbm_to_vmem [thread:$0]  %s0, 768, %s14, [#allocation3], 128, 128, 8
    $region5: #{tpu_custom_call.1} parent=1 // pred_fallthru
      _
    // Predicated region
    $region6: #{tpu_custom_call.1} parent=1 // pred_check
      _
    $region7: #{tpu_custom_call.1} parent=1 // pred_check_branch
      %21 = sbr.rel (0) target = $region9
    $region8: #{tpu_custom_call.1} parent=1 // pred_region
      %22 = dma.done [#allocation3], 768
    $region9: #{tpu_custom_call.1} parent=1 // pred_fallthru
      _
    %v23 = vld [vmem:[#allocation2] sm:$0xff]
    %v24 = vld [vmem:[#allocation2 + $0x8] sm:$0xff]
    %s25 = scalar_lea.vmem [#allocation2], 16
    %v26 = vld [vmem:[%s25] sm:$0xff]
    %v27 = vld [vmem:[%s25 + $0x8] sm:$0xff]
    %s28 = scalar_lea.vmem [#allocation2], 32
    %v29 = vld [vmem:[%s28] sm:$0xff]
    %v30 = vld [vmem:[%s28 + $0x8] sm:$0xff]
    %v31 = vmax.f32 %v23, %v26
    %v32 = vmax.f32 %v24, %v27
    %v33 = vmax.f32 %v31, %v29
    %v34 = vmax.f32 %v32, %v30
    %v35 = vmin.f32 %v23, %v26
    %v36 = vmin.f32 %v24, %v27
    %v37 = vmin.f32 %v35, %v29
    %v38 = vmin.f32 %v36, %v30
    %v39 = vsub.f32 %v33, %v37
    %v40 = vsub.f32 %v34, %v38
    %vm41 = vcmp.gt.f32.partialorder %v33, 0.0
    %vm42 = vcmp.gt.f32.partialorder %v34, 0.0
    %v43 = vadd.f32 %v33, 1e-08
    %v44 = vadd.f32 %v34, 1e-08
    %v45 = vrcp.pop %v43
    %v46 = vmul.f32 %v39, %v45
    %v47 = vrcp.pop %v44
    %v48 = vmul.f32 %v40, %v47
    %v49 = vsel %vm41, %v46, 0.0
    %v50 = vsel %vm42, %v48, 0.0
    %vm51 = vcmp.gt.f32.partialorder %v39, 0.0
    %vm52 = vcmp.gt.f32.partialorder %v40, 0.0
    %v53 = vsel %vm51, %v39, 1.0
    %v54 = vsel %vm52, %v40, 1.0
    %v55 = vsub.f32 %v33, %v23
    %v56 = vsub.f32 %v34, %v24
    %v57 = vrcp.pop %v53
    %v58 = vmul.f32 %v55, %v57
    %v59 = vrcp.pop %v54
    %v60 = vmul.f32 %v56, %v59
    %v61 = vsub.f32 %v33, %v26
    %v62 = vsub.f32 %v34, %v27
    %v63 = vmul.f32 %v61, %v57
    %v64 = vmul.f32 %v62, %v59
    %v65 = vsub.f32 %v33, %v29
    %v66 = vsub.f32 %v34, %v30
    %v67 = vmul.f32 %v65, %v57
    %v68 = vmul.f32 %v66, %v59
    %vm69 = vcmp.eq.f32.partialorder %v33, %v23
    %vm70 = vcmp.eq.f32.partialorder %v34, %v24
    %v71 = vsub.f32 %v67, %v63
    %v72 = vsub.f32 %v68, %v64
    %vm73 = vcmp.eq.f32.partialorder %v33, %v26
    %vm74 = vcmp.eq.f32.partialorder %v34, %v27
    %v75 = vadd.f32 %v58, 2.0
    %v76 = vadd.f32 %v60, 2.0
    %v77 = vsub.f32 %v75, %v67
    %v78 = vsub.f32 %v76, %v68
    %v79 = vadd.f32 %v63, 4.0
    %v80 = vadd.f32 %v64, 4.0
    %v81 = vsub.f32 %v79, %v58
    %v82 = vsub.f32 %v80, %v60
    %v83 = vsel %vm73, %v77, %v81
    %v84 = vsel %vm74, %v78, %v82
    %v85 = vsel %vm69, %v71, %v83
    %v86 = vsel %vm70, %v72, %v84
    %v87 = vrcp.pop 6.0
    %v88 = vmul.f32 %v85, %v87
    %v89 = vmul.f32 %v86, %v87
    %v90 = vand.u32 2147483647, %v88
    %v91 = vrcp.pop 1.0
    %v92 = vmul.f32 %v90, %v91
    %v93 = vfloor.f32 %v92
    %v94 = vsub.f32 %v90, %v93
    %vm95 = vcmp.eq.f32.partialorder %v94, 1.0
    %v96 = vsel %vm95, 0.0, %v94
    %v97 = vand.u32 2147483647, %v96
    %v98 = vand.u32 %v88, 2147483648
    %v99 = vor.u32 %v97, %v98
    %v100 = vand.u32 2147483647, %v89
    %v101 = vrcp.pop 1.0
    %v102 = vmul.f32 %v100, %v101
    %v103 = vfloor.f32 %v102
    %v104 = vsub.f32 %v100, %v103
    %vm105 = vcmp.eq.f32.partialorder %v104, 1.0
    %v106 = vsel %vm105, 0.0, %v104
    %v107 = vand.u32 2147483647, %v106
    %v108 = vand.u32 %v89, 2147483648
    %v109 = vor.u32 %v107, %v108
    %vm110 = vcmp.ne.f32.partialorder %v99, 0.0
    %vm111 = vcmp.ne.f32.partialorder %v109, 0.0
    %vm112 = vcmp.lt.f32.partialorder %v99, 0.0
    %vm113 = vcmp.lt.f32.partialorder %v109, 0.0
    %vm114 = vmand %vm112, %vm110
    %vm115 = vmand %vm113, %vm111
    %v116 = vadd.f32 %v99, 1.0
    %v117 = vadd.f32 %v109, 1.0
    %v118 = vsel %vm114, %v116, %v99
    %v119 = vsel %vm115, %v117, %v109
    %v120 = vsel %vm51, %v118, 0.0
    %v121 = vsel %vm52, %v119, 0.0
    %v122 = vmul.f32 %v120, 6.2831855
    %v123 = vmul.f32 %v121, 6.2831855
    %vm124 = vcmask 130048
    %125 = vst.msk [vmem:[#allocation5] sm:$0xff] %vm124, %v122
    %126 = vst.msk [vmem:[#allocation5 + $0x8] sm:$0xff] %vm124, %v123
    %s127 = scalar_lea.vmem [#allocation5], 16
    %128 = vst.msk [vmem:[%s127] sm:$0xff] %vm124, %v49
    %129 = vst.msk [vmem:[%s127 + $0x8] sm:$0xff] %vm124, %v50
    %s130 = scalar_lea.vmem [#allocation5], 32
    %131 = vst.msk [vmem:[%s130] sm:$0xff] %vm124, %v33
    %132 = vst.msk [vmem:[%s130 + $0x8] sm:$0xff] %vm124, %v34
    %v133 = vmul.f32 %v23, 0.299
    %v134 = vmul.f32 %v24, 0.299
    %v135 = vmul.f32 %v26, 0.587
    %v136 = vmul.f32 %v27, 0.587
    %v137 = vadd.f32 %v133, %v135
    %v138 = vadd.f32 %v134, %v136
    %v139 = vmul.f32 %v29, 0.114
    %v140 = vmul.f32 %v30, 0.114
    %v141 = vadd.f32 %v137, %v139
    %v142 = vadd.f32 %v138, %v140
    %s143 = scalar_lea.vmem [#allocation5], 48
    %144 = vst.msk [vmem:[%s143] sm:$0xff] %vm124, %v141
    %145 = vst.msk [vmem:[%s143 + $0x8] sm:$0xff] %vm124, %v142
    // Predicated region
    $region10: #{tpu_custom_call.1} parent=1 // pred_check
      _
    $region11: #{tpu_custom_call.1} parent=1 // pred_check_branch
      %147 = sbr.rel (0) target = $region13
    $region12: #{tpu_custom_call.1} parent=1 // pred_region
      %s149 = ssub.s32 1024, 1024
      %150 = vsyncadd [#allocation4], %s149
      %s151 = sshll.u32 [#allocation5], 4
      %s152 = int_to_ptr.vmem [resolvable:$true] %s151
      %157 = dma.vmem_to_hbm [thread:$0]  %s152, 1024, %s1, [#allocation4], 128, 128, 8
    $region13: #{tpu_custom_call.1} parent=1 // pred_fallthru
      _
    // Predicated region
    $region14: #{tpu_custom_call.1} parent=1 // pred_check
      _
    $region15: #{tpu_custom_call.1} parent=1 // pred_check_branch
      %159 = sbr.rel (0) target = $region17
    $region16: #{tpu_custom_call.1} parent=1 // pred_region
      %160 = dma.done [#allocation4], 1024
    $region17: #{tpu_custom_call.1} parent=1 // pred_fallthru
      _
    %161 = vsyncpa [#allocation3], 1
    %162 = vsyncpa [#allocation4], 1

</llo_original>
